<compile_context>
chip_gen: v7x
topology: tpu7x:2x2x1
jax: 0.10.0
libtpu: 0.0.40
codegen_flags: <defaults>
</compile_context>

<pallas_src>
import functools

import jax
import jax.numpy as jnp
import numpy as np
from jax import lax
from jax.experimental import pallas as pl
from jax.experimental.pallas import tpu as pltpu


def _hazard_kernel(phi_ref, dur_col_ref, ev_col_ref, dur_row_ref, ev_row_ref,
                   ycat_ref, nll_ref, rank_ref, kmat_ref, valid_ref, *, sigma):
    f32 = jnp.float32
    phi = phi_ref[...]            # (B, D)
    dur_col = dur_col_ref[...]    # (B, 1) f32 (integer-valued)
    ev_col = ev_col_ref[...]      # (B, 1) f32 in {0,1}
    dur_row = dur_row_ref[...]    # (1, B)
    ev_row = ev_row_ref[...]      # (1, B)
    y_cat = ycat_ref[...]         # (B, 2T) = [onehot(idx) | onehot(idx)*events]
    B = phi.shape[0]
    T = y_cat.shape[1] // 2

    # ---- symmetric squared pairwise distances + Gaussian kernel (MXU) -------
    r = lax.dot_general(phi, phi, (((1,), (1,)), ((), ())),
                        preferred_element_type=f32)              # (B, B)
    row = lax.broadcasted_iota(jnp.int32, (B, B), 0)
    col = lax.broadcasted_iota(jnp.int32, (B, B), 1)
    eye = (row == col).astype(f32)
    r_diag = r * eye
    # r is symmetric -> diagonal as a column (lane reduce) and a row (sublane
    # reduce); avoids transposing a (B,1) vector.
    diag_col = jnp.sum(r_diag, axis=1, keepdims=True)            # (B, 1)
    diag_row = jnp.sum(r_diag, axis=0, keepdims=True)            # (1, B)
    d2 = diag_col + diag_row - 2.0 * r                           # diag exactly 0
    kmat = jnp.exp(-d2)
    kmat_ref[...] = kmat

    # ---- fused leave-one-out aggregation: one MXU pass, no w_loo temporary --
    #   (kmat - I) @ y_cat == kmat @ y_cat - y_cat
    agg = jnp.dot(kmat, y_cat, preferred_element_type=f32) - y_cat   # (B, 2T)
    wd = agg[:, :T]                                              # w_loo @ onehot(idx)
    num_events = agg[:, T:]                                      # w_loo @ y_bce

    # ---- cumsums along time as triangular matmuls (MXU) ---------------------
    s_idx = lax.broadcasted_iota(jnp.int32, (T, T), 0)
    t_idx = lax.broadcasted_iota(jnp.int32, (T, T), 1)
    fwd_tri = (s_idx <= t_idx).astype(f32)                       # forward cumsum mask
    # reverse cumsum == contraction against fwd_tri^T (no second mask built)
    num_at_risk = lax.dot_general(wd, fwd_tri, (((1,), (1,)), ((), ())),
                                  preferred_element_type=f32) + 1e-12
    hazards = jnp.clip(num_events / num_at_risk, 1e-12, 1.0 - 1e-12)

    # hazards-in-[0,1] guard of the reference implementation (fails only on NaN)
    ok = ((hazards >= 0.0) & (hazards <= 1.0)).astype(f32)
    valid_ref[...] = jnp.min(jnp.min(ok, axis=1, keepdims=True),
                             axis=0, keepdims=True)

    y_onehot = y_cat[:, :T]
    y_bce = y_cat[:, T:]
    # F.binary_cross_entropy clamps log terms at -100
    log_h = jnp.maximum(jnp.log(hazards), -100.0)
    log_1mh = jnp.maximum(jnp.log(1.0 - hazards), -100.0)
    bce = -(y_bce * log_h + (1.0 - y_bce) * log_1mh)
    log_s = jnp.log(1.0 - hazards + 1e-12)

    # both forward cumsums share the same triangular RHS -> fuse into one matmul
    fused = jnp.dot(jnp.concatenate([bce, log_s], axis=0), fwd_tri,
                    preferred_element_type=f32)                  # (2B, T)
    bce_cum = fused[:B]
    surv = jnp.exp(fused[B:])                                    # survival curve

    # gather(1, idx_durations) == reduce against the one-hot
    nll_ref[...] = jnp.sum(bce_cum * y_onehot, axis=-1, keepdims=True)

    # ---- ranking loss --------------------------------------------------------
    # A^T[i,j] = A[j,i] = sum_t y_bce[i,t] * surv[j,t]  (avoids explicit transpose)
    a_t = lax.dot_general(y_bce, surv, (((1,), (1,)), ((), ())),
                          preferred_element_type=f32)
    diag_a = jnp.sum(surv * y_bce, axis=-1, keepdims=True)       # A[i,i]
    diffs = diag_a - a_t                                         # differences[i,j]

    cond = (dur_col < dur_row) | ((dur_col == dur_row) & (ev_row == 0.0))
    rank_mat = ev_col * cond.astype(f32)                         # pair_rank_mat
    rank_ref[...] = jnp.mean(rank_mat * jnp.exp(diffs / sigma),
                             axis=-1, keepdims=True)


def nll_kernel_hazard_forward(phi, idx_durations, events, *, alpha, sigma, gamma,
                              reduction="mean"):
    """Pallas equivalent of NLLKernelHazardLoss.forward."""
    phi = phi.astype(jnp.float32)
    B, D = phi.shape
    # TODO(synk): num_durations = idx_durations.max()+1 is data-dependent in the
    # PyTorch module; resolved here to a static Python int (concrete inputs).
    T = int(jax.device_get(jnp.max(idx_durations))) + 1

    dur_f = idx_durations.astype(jnp.float32)
    ev_f = events.astype(jnp.float32)
    dur_col = dur_f.reshape(B, 1)
    ev_col = ev_f.reshape(B, 1)
    dur_row = dur_f.reshape(1, B)
    ev_row = ev_f.reshape(1, B)
    y_onehot = jax.nn.one_hot(idx_durations.reshape(-1), T, dtype=jnp.float32)
    y_cat = jnp.concatenate([y_onehot, y_onehot * ev_col], axis=1)        # (B, 2T)

    flops = (2 * B * B * D + 2 * B * B * (2 * T) + 2 * B * T * T
             + 4 * B * T * T + 2 * B * B * T + 20 * B * B + 15 * B * T)
    transcendentals = 2 * B * B + 5 * B * T
    bytes_accessed = 4 * (B * D + 4 * B + B * 2 * T + B * B + 2 * B + 1)

    kernel = functools.partial(_hazard_kernel, sigma=float(sigma))

    nll, rank, kmat, valid = pl.pallas_call(
        kernel,
        out_shape=(jax.ShapeDtypeStruct((B, 1), jnp.float32),
                   jax.ShapeDtypeStruct((B, 1), jnp.float32),
                   jax.ShapeDtypeStruct((B, B), jnp.float32),
                   jax.ShapeDtypeStruct((1, 1), jnp.float32)),
        grid_spec=pltpu.PrefetchScalarGridSpec(
            num_scalar_prefetch=0,
            grid=(1,),
            in_specs=[
                pl.BlockSpec((B, D), lambda i: (0, 0)),        # phi
                pl.BlockSpec((B, 1), lambda i: (0, 0)),        # durations (col)
                pl.BlockSpec((B, 1), lambda i: (0, 0)),        # events (col)
                pl.BlockSpec((1, B), lambda i: (0, 0)),        # durations (row)
                pl.BlockSpec((1, B), lambda i: (0, 0)),        # events (row)
                pl.BlockSpec((B, 2 * T), lambda i: (0, 0)),    # [onehot | y_bce]
            ],
            out_specs=[
                pl.BlockSpec((B, 1), lambda i: (0, 0)),        # per-sample nll
                pl.BlockSpec((B, 1), lambda i: (0, 0)),        # per-sample rank loss
                pl.BlockSpec((B, B), lambda i: (0, 0)),        # kernel matrix
                pl.BlockSpec((1, 1), lambda i: (0, 0)),        # validity flag
            ]),
        compiler_params=pltpu.CompilerParams(
            dimension_semantics=("arbitrary",),
            vmem_limit_bytes=32 * 1024 * 1024),
        cost_estimate=pl.CostEstimate(flops=flops,
                                      transcendentals=transcendentals,
                                      bytes_accessed=bytes_accessed),
    )(phi, dur_col, ev_col, dur_row, ev_row, y_cat)

    nll = nll.reshape(-1)
    rank = rank.reshape(-1)

    def _reduce(x):
        if reduction == "mean":
            return jnp.mean(x)
        if reduction == "sum":
            return jnp.sum(x)
        return x

    if gamma > 0:
        # TODO(synk): torch.logdet (matrix factorization) has no Pallas
        # equivalent; computed with jnp.linalg.slogdet on the kernel-matrix output.
        uniformity = gamma * (-jnp.linalg.slogdet(
            kmat + 1e-6 * jnp.eye(B, dtype=jnp.float32))[1])
    else:
        uniformity = 0.0

    if alpha < 1:
        loss = alpha * _reduce(nll) + (1.0 - alpha) * _reduce(rank) + uniformity
    else:
        loss = _reduce(nll) + uniformity

    # reference returns +inf when any hazard falls outside [0, 1]
    return jnp.where(valid[0, 0] > 0.0, loss, jnp.float32(jnp.inf))


def _reference_numpy(phi, idx_durations, events, alpha, sigma, gamma):
    """float64 numpy reference mirroring nll_kernel_hazard."""
    phi = np.asarray(phi, np.float64)
    dur = np.asarray(idx_durations, np.int64)
    ev = np.asarray(events, np.float64).reshape(-1, 1)
    B = phi.shape[0]
    T = int(dur.max()) + 1
    y1 = np.zeros((B, T)); y1[np.arange(B), dur] = 1.0
    y_bce = y1 * ev
    r = phi @ phi.T
    diag = np.diag(r)[None, :]
    d2 = diag + diag.T - 2.0 * r
    kmat = np.exp(-d2)
    w = kmat - np.eye(B)
    wd = w @ y1
    num_at_risk = np.flip(np.cumsum(np.flip(wd, 1), 1), 1) + 1e-12
    num_events = w @ y_bce
    hazards = np.clip(num_events / num_at_risk, 1e-12, 1.0 - 1e-12)
    log_h = np.maximum(np.log(hazards), -100.0)
    log_1mh = np.maximum(np.log(1.0 - hazards), -100.0)
    bce = -(y_bce * log_h + (1.0 - y_bce) * log_1mh)
    nll = np.cumsum(bce, 1)[np.arange(B), dur]
    uni = gamma * -np.linalg.slogdet(kmat + 1e-6 * np.eye(B))[1] if gamma > 0 else 0.0
    if alpha < 1:
        di = dur.reshape(-1, 1).astype(np.float64); dj = di.T; evj = ev.T
        rank_mat = ev * (((di < dj) | ((di == dj) & (evj == 0))).astype(np.float64))
        surv = np.exp(np.cumsum(np.log(1.0 - hazards + 1e-12), 1))
        A = surv @ y_bce.T
        diag_A = np.diag(A)[None, :]
        differences = (np.ones((B, 1)) @ diag_A - A).T
        rank_loss = (rank_mat * np.exp(differences / sigma)).mean(1)
        return alpha * nll.mean() + (1 - alpha) * rank_loss.mean() + uni
    return nll.mean() + uni


if __name__ == "__main__":
    key = jax.random.PRNGKey(0)
    B, D = 16, 32
    alpha, sigma, gamma = 0.5, 0.5, 0.1

    phi = 0.15 * jax.random.normal(key, (B, D), jnp.float32)
    idx_durations = jnp.array([0, 1, 2, 3, 4, 5, 6, 7,
                               0, 1, 2, 3, 4, 5, 6, 7], dtype=jnp.int32)
    events = jnp.array([1, 0, 1, 1, 0, 1, 1, 0,
                        1, 1, 0, 1, 1, 1, 0, 0], dtype=jnp.float32)

    loss = nll_kernel_hazard_forward(phi, idx_durations, events,
                                     alpha=alpha, sigma=sigma, gamma=gamma)
    loss = jax.block_until_ready(loss)

    ref = _reference_numpy(phi, idx_durations, events, alpha, sigma, gamma)
    np.testing.assert_allclose(np.asarray(loss), np.asarray(ref),
                               rtol=5e-3, atol=1e-3)
    print("KERNEL_OK")
</pallas_src>

<mosaic_0001>
module attributes {stable_mosaic.version = 11 : i64} {
  func.func @_hazard_kernel(%arg0: i32, %arg1: memref<16x32xf32, #tpu.memory_space<vmem>>, %arg2: memref<16x1xf32, #tpu.memory_space<vmem>>, %arg3: memref<16x1xf32, #tpu.memory_space<vmem>>, %arg4: memref<1x16xf32, #tpu.memory_space<vmem>>, %arg5: memref<1x16xf32, #tpu.memory_space<vmem>>, %arg6: memref<16x16xf32, #tpu.memory_space<vmem>>, %arg7: memref<16x1xf32, #tpu.memory_space<vmem>>, %arg8: memref<16x1xf32, #tpu.memory_space<vmem>>, %arg9: memref<16x16xf32, #tpu.memory_space<vmem>>, %arg10: memref<1x1xf32, #tpu.memory_space<vmem>>) attributes {dimension_semantics = [#tpu.dimension_semantics<arbitrary>], iteration_bounds = array<i64: 1>, scalar_prefetch = 0 : i64, scratch_operands = 0 : i64, tpu.core_type = #tpu.core_type<tc>, window_params = [{pipeline_mode = #tpu.pipeline_mode<synchronous>, transform_indices = @transform_0, window_bounds = array<i64: 16, 32>}, {pipeline_mode = #tpu.pipeline_mode<synchronous>, transform_indices = @transform_1, window_bounds = array<i64: 16, 1>}, {pipeline_mode = #tpu.pipeline_mode<synchronous>, transform_indices = @transform_2, window_bounds = array<i64: 16, 1>}, {pipeline_mode = #tpu.pipeline_mode<synchronous>, transform_indices = @transform_3, window_bounds = array<i64: 1, 16>}, {pipeline_mode = #tpu.pipeline_mode<synchronous>, transform_indices = @transform_4, window_bounds = array<i64: 1, 16>}, {pipeline_mode = #tpu.pipeline_mode<synchronous>, transform_indices = @transform_5, window_bounds = array<i64: 16, 16>}, {pipeline_mode = #tpu.pipeline_mode<synchronous>, transform_indices = @transform_6, window_bounds = array<i64: 16, 1>}, {pipeline_mode = #tpu.pipeline_mode<synchronous>, transform_indices = @transform_7, window_bounds = array<i64: 16, 1>}, {pipeline_mode = #tpu.pipeline_mode<synchronous>, transform_indices = @transform_8, window_bounds = array<i64: 16, 16>}, {pipeline_mode = #tpu.pipeline_mode<synchronous>, transform_indices = @transform_9, window_bounds = array<i64: 1, 1>}]} {
    %c0 = arith.constant 0 : index
    %c0_0 = arith.constant 0 : index
    %0 = vector.load %arg1[%c0, %c0_0] : memref<16x32xf32, #tpu.memory_space<vmem>>, vector<16x32xf32>
    %c0_1 = arith.constant 0 : index
    %c0_2 = arith.constant 0 : index
    %1 = vector.load %arg2[%c0_1, %c0_2] : memref<16x1xf32, #tpu.memory_space<vmem>>, vector<16x1xf32>
    %c0_3 = arith.constant 0 : index
    %c0_4 = arith.constant 0 : index
    %2 = vector.load %arg3[%c0_3, %c0_4] : memref<16x1xf32, #tpu.memory_space<vmem>>, vector<16x1xf32>
    %c0_5 = arith.constant 0 : index
    %c0_6 = arith.constant 0 : index
    %3 = vector.load %arg4[%c0_5, %c0_6] : memref<1x16xf32, #tpu.memory_space<vmem>>, vector<1x16xf32>
    %c0_7 = arith.constant 0 : index
    %c0_8 = arith.constant 0 : index
    %4 = vector.load %arg5[%c0_7, %c0_8] : memref<1x16xf32, #tpu.memory_space<vmem>>, vector<1x16xf32>
    %c0_9 = arith.constant 0 : index
    %c0_10 = arith.constant 0 : index
    %5 = vector.load %arg6[%c0_9, %c0_10] : memref<16x16xf32, #tpu.memory_space<vmem>>, vector<16x16xf32>
    %cst = arith.constant dense<0.000000e+00> : vector<16x16xf32>
    %6 = tpu.matmul %0, %0, %cst {dimension_numbers = #tpu.dot_dimension_numbers<[1], [1], [0], [0], [0, 0, 1, 0], [], []>} : vector<16x32xf32>, vector<16x32xf32>, vector<16x16xf32> -> vector<16x16xf32>
    %7 = tpu.iota {dimensions = array<i32: 0>} : vector<16x16xi32>
    %8 = tpu.iota {dimensions = array<i32: 1>} : vector<16x16xi32>
    %9 = arith.cmpi eq, %7, %8 : vector<16x16xi32>
    %10 = arith.extui %9 : vector<16x16xi1> to vector<16x16xi32>
    %11 = arith.sitofp %10 : vector<16x16xi32> to vector<16x16xf32>
    %12 = arith.mulf %6, %11 : vector<16x16xf32>
    %cst_11 = arith.constant dense<0.000000e+00> : vector<16xf32>
    %13 = vector.multi_reduction <add>, %12, %cst_11 [1] : vector<16x16xf32> to vector<16xf32>
    %14 = vector.shape_cast %13 : vector<16xf32> to vector<16x1xf32>
    %cst_12 = arith.constant dense<0.000000e+00> : vector<16xf32>
    %15 = vector.multi_reduction <add>, %12, %cst_12 [0] : vector<16x16xf32> to vector<16xf32>
    %16 = vector.shape_cast %15 : vector<16xf32> to vector<1x16xf32>
    %17 = vector.broadcast %14 : vector<16x1xf32> to vector<16x16xf32>
    %18 = vector.broadcast %16 : vector<1x16xf32> to vector<16x16xf32>
    %19 = arith.addf %17, %18 : vector<16x16xf32>
    %cst_13 = arith.constant 2.000000e+00 : f32
    %20 = vector.broadcast %cst_13 : f32 to vector<16x16xf32>
    %21 = arith.mulf %20, %6 : vector<16x16xf32>
    %22 = arith.subf %19, %21 : vector<16x16xf32>
    %cst_14 = arith.constant 0.000000e+00 : f32
    %23 = vector.broadcast %cst_14 : f32 to vector<16x16xf32>
    %24 = arith.subf %23, %22 : vector<16x16xf32>
    %25 = math.exp %24 : vector<16x16xf32>
    %c0_15 = arith.constant 0 : index
    %c0_16 = arith.constant 0 : index
    %26 = vector.load %arg9[%c0_15, %c0_16] : memref<16x16xf32, #tpu.memory_space<vmem>>, vector<16x16xf32>
    tpu.vector_store %arg9[%c0_15, %c0_16], %25 {strides = array<i32>} : memref<16x16xf32, #tpu.memory_space<vmem>>, vector<16x16xf32>,
    %cst_17 = arith.constant dense<0.000000e+00> : vector<16x16xf32>
    %27 = tpu.matmul %25, %5, %cst_17 {dimension_numbers = #tpu.dot_dimension_numbers<[1], [0], [0], [1], [0, 0, 1, 1], [], []>} : vector<16x16xf32>, vector<16x16xf32>, vector<16x16xf32> -> vector<16x16xf32>
    %28 = arith.subf %27, %5 : vector<16x16xf32>
    %29 = vector.extract_strided_slice %28 {offsets = [0, 0], sizes = [16, 8], strides = [1, 1]} : vector<16x16xf32> to vector<16x8xf32>
    %30 = vector.extract_strided_slice %28 {offsets = [0, 8], sizes = [16, 8], strides = [1, 1]} : vector<16x16xf32> to vector<16x8xf32>
    %31 = tpu.iota {dimensions = array<i32: 0>} : vector<8x8xi32>
    %32 = tpu.iota {dimensions = array<i32: 1>} : vector<8x8xi32>
    %33 = arith.cmpi sle, %31, %32 : vector<8x8xi32>
    %34 = arith.extui %33 : vector<8x8xi1> to vector<8x8xi32>
    %35 = arith.sitofp %34 : vector<8x8xi32> to vector<8x8xf32>
    %cst_18 = arith.constant dense<0.000000e+00> : vector<16x8xf32>
    %36 = tpu.matmul %29, %35, %cst_18 {dimension_numbers = #tpu.dot_dimension_numbers<[1], [1], [0], [0], [0, 0, 1, 0], [], []>} : vector<16x8xf32>, vector<8x8xf32>, vector<16x8xf32> -> vector<16x8xf32>
    %cst_19 = arith.constant 9.99999996E-13 : f32
    %37 = vector.broadcast %cst_19 : f32 to vector<16x8xf32>
    %38 = arith.addf %36, %37 : vector<16x8xf32>
    %39 = arith.divf %30, %38 : vector<16x8xf32>
    %cst_20 = arith.constant 9.99999996E-13 : f32
    %cst_21 = arith.constant 1.000000e+00 : f32
    %40 = vector.broadcast %cst_20 : f32 to vector<16x8xf32>
    %41 = arith.maximumf %40, %39 : vector<16x8xf32>
    %42 = vector.broadcast %cst_21 : f32 to vector<16x8xf32>
    %43 = arith.minimumf %42, %41 : vector<16x8xf32>
    %cst_22 = arith.constant 0.000000e+00 : f32
    %44 = vector.broadcast %cst_22 : f32 to vector<16x8xf32>
    %45 = arith.cmpf oge, %43, %44 : vector<16x8xf32>
    %cst_23 = arith.constant 1.000000e+00 : f32
    %46 = vector.broadcast %cst_23 : f32 to vector<16x8xf32>
    %47 = arith.cmpf ole, %43, %46 : vector<16x8xf32>
    %48 = arith.andi %45, %47 : vector<16x8xi1>
    %49 = arith.extui %48 : vector<16x8xi1> to vector<16x8xi32>
    %50 = arith.sitofp %49 : vector<16x8xi32> to vector<16x8xf32>
    %cst_24 = arith.constant dense<0x7F800000> : vector<16xf32>
    %51 = vector.multi_reduction <minimumf>, %50, %cst_24 [1] : vector<16x8xf32> to vector<16xf32>
    %52 = vector.shape_cast %51 : vector<16xf32> to vector<16x1xf32>
    %cst_25 = arith.constant dense<0x7F800000> : vector<1xf32>
    %53 = vector.multi_reduction <minimumf>, %52, %cst_25 [0] : vector<16x1xf32> to vector<1xf32>
    %54 = vector.shape_cast %53 : vector<1xf32> to vector<1x1xf32>
    %c0_26 = arith.constant 0 : index
    %c0_27 = arith.constant 0 : index
    %55 = vector.load %arg10[%c0_26, %c0_27] : memref<1x1xf32, #tpu.memory_space<vmem>>, vector<1x1xf32>
    tpu.vector_store %arg10[%c0_26, %c0_27], %54 {strides = array<i32>} : memref<1x1xf32, #tpu.memory_space<vmem>>, vector<1x1xf32>,
    %56 = vector.extract_strided_slice %5 {offsets = [0, 0], sizes = [16, 8], strides = [1, 1]} : vector<16x16xf32> to vector<16x8xf32>
    %57 = vector.extract_strided_slice %5 {offsets = [0, 8], sizes = [16, 8], strides = [1, 1]} : vector<16x16xf32> to vector<16x8xf32>
    %58 = math.log %43 : vector<16x8xf32>
    %cst_28 = arith.constant -1.000000e+02 : f32
    %59 = vector.broadcast %cst_28 : f32 to vector<16x8xf32>
    %60 = arith.maximumf %58, %59 : vector<16x8xf32>
    %cst_29 = arith.constant 1.000000e+00 : f32
    %61 = vector.broadcast %cst_29 : f32 to vector<16x8xf32>
    %62 = arith.subf %61, %43 : vector<16x8xf32>
    %63 = math.log %62 : vector<16x8xf32>
    %cst_30 = arith.constant -1.000000e+02 : f32
    %64 = vector.broadcast %cst_30 : f32 to vector<16x8xf32>
    %65 = arith.maximumf %63, %64 : vector<16x8xf32>
    %66 = arith.mulf %57, %60 : vector<16x8xf32>
    %cst_31 = arith.constant 1.000000e+00 : f32
    %67 = vector.broadcast %cst_31 : f32 to vector<16x8xf32>
    %68 = arith.subf %67, %57 : vector<16x8xf32>
    %69 = arith.mulf %68, %65 : vector<16x8xf32>
    %70 = arith.addf %66, %69 : vector<16x8xf32>
    %cst_32 = arith.constant 0.000000e+00 : f32
    %71 = vector.broadcast %cst_32 : f32 to vector<16x8xf32>
    %72 = arith.subf %71, %70 : vector<16x8xf32>
    %cst_33 = arith.constant 1.000000e+00 : f32
    %73 = vector.broadcast %cst_33 : f32 to vector<16x8xf32>
    %74 = arith.subf %73, %43 : vector<16x8xf32>
    %cst_34 = arith.constant 9.99999996E-13 : f32
    %75 = vector.broadcast %cst_34 : f32 to vector<16x8xf32>
    %76 = arith.addf %74, %75 : vector<16x8xf32>
    %77 = math.log %76 : vector<16x8xf32>
    %78 = tpu.concatenate %72, %77 in 0 : vector<16x8xf32>, vector<16x8xf32> -> vector<32x8xf32>
    %cst_35 = arith.constant dense<0.000000e+00> : vector<32x8xf32>
    %79 = tpu.matmul %78, %35, %cst_35 {dimension_numbers = #tpu.dot_dimension_numbers<[1], [0], [0], [1], [0, 0, 1, 1], [], []>} : vector<32x8xf32>, vector<8x8xf32>, vector<32x8xf32> -> vector<32x8xf32>
    %80 = vector.extract_strided_slice %79 {offsets = [0, 0], sizes = [16, 8], strides = [1, 1]} : vector<32x8xf32> to vector<16x8xf32>
    %81 = vector.extract_strided_slice %79 {offsets = [16, 0], sizes = [16, 8], strides = [1, 1]} : vector<32x8xf32> to vector<16x8xf32>
    %82 = math.exp %81 : vector<16x8xf32>
    %83 = arith.mulf %80, %56 : vector<16x8xf32>
    %cst_36 = arith.constant dense<0.000000e+00> : vector<16xf32>
    %84 = vector.multi_reduction <add>, %83, %cst_36 [1] : vector<16x8xf32> to vector<16xf32>
    %85 = vector.shape_cast %84 : vector<16xf32> to vector<16x1xf32>
    %c0_37 = arith.constant 0 : index
    %c0_38 = arith.constant 0 : index
    %86 = vector.load %arg7[%c0_37, %c0_38] : memref<16x1xf32, #tpu.memory_space<vmem>>, vector<16x1xf32>
    tpu.vector_store %arg7[%c0_37, %c0_38], %85 {strides = array<i32>} : memref<16x1xf32, #tpu.memory_space<vmem>>, vector<16x1xf32>,
    %cst_39 = arith.constant dense<0.000000e+00> : vector<16x16xf32>
    %87 = tpu.matmul %57, %82, %cst_39 {dimension_numbers = #tpu.dot_dimension_numbers<[1], [1], [0], [0], [0, 0, 1, 0], [], []>} : vector<16x8xf32>, vector<16x8xf32>, vector<16x16xf32> -> vector<16x16xf32>
    %88 = arith.mulf %82, %57 : vector<16x8xf32>
    %cst_40 = arith.constant dense<0.000000e+00> : vector<16xf32>
    %89 = vector.multi_reduction <add>, %88, %cst_40 [1] : vector<16x8xf32> to vector<16xf32>
    %90 = vector.shape_cast %89 : vector<16xf32> to vector<16x1xf32>
    %91 = vector.broadcast %90 : vector<16x1xf32> to vector<16x16xf32>
    %92 = arith.subf %91, %87 : vector<16x16xf32>
    %93 = vector.broadcast %1 : vector<16x1xf32> to vector<16x16xf32>
    %94 = vector.broadcast %3 : vector<1x16xf32> to vector<16x16xf32>
    %95 = arith.cmpf olt, %93, %94 : vector<16x16xf32>
    %96 = vector.broadcast %1 : vector<16x1xf32> to vector<16x16xf32>
    %97 = vector.broadcast %3 : vector<1x16xf32> to vector<16x16xf32>
    %98 = arith.cmpf oeq, %96, %97 : vector<16x16xf32>
    %cst_41 = arith.constant 0.000000e+00 : f32
    %99 = vector.broadcast %cst_41 : f32 to vector<1x16xf32>
    %100 = arith.cmpf oeq, %4, %99 : vector<1x16xf32>
    %101 = vector.broadcast %100 : vector<1x16xi1> to vector<16x16xi1>
    %102 = arith.andi %98, %101 : vector<16x16xi1>
    %103 = arith.ori %95, %102 : vector<16x16xi1>
    %104 = arith.extui %103 : vector<16x16xi1> to vector<16x16xi32>
    %105 = arith.sitofp %104 : vector<16x16xi32> to vector<16x16xf32>
    %106 = vector.broadcast %2 : vector<16x1xf32> to vector<16x16xf32>
    %107 = arith.mulf %106, %105 : vector<16x16xf32>
    %cst_42 = arith.constant 5.000000e-01 : f32
    %108 = vector.broadcast %cst_42 : f32 to vector<16x16xf32>
    %109 = arith.divf %92, %108 : vector<16x16xf32>
    %110 = math.exp %109 : vector<16x16xf32>
    %111 = arith.mulf %107, %110 : vector<16x16xf32>
    %cst_43 = arith.constant dense<0.000000e+00> : vector<16xf32>
    %112 = vector.multi_reduction <add>, %111, %cst_43 [1] : vector<16x16xf32> to vector<16xf32>
    %113 = vector.shape_cast %112 : vector<16xf32> to vector<16x1xf32>
    %cst_44 = arith.constant 1.600000e+01 : f32
    %114 = vector.broadcast %cst_44 : f32 to vector<16x1xf32>
    %115 = arith.divf %113, %114 : vector<16x1xf32>
    %c0_45 = arith.constant 0 : index
    %c0_46 = arith.constant 0 : index
    %116 = vector.load %arg8[%c0_45, %c0_46] : memref<16x1xf32, #tpu.memory_space<vmem>>, vector<16x1xf32>
    tpu.vector_store %arg8[%c0_45, %c0_46], %115 {strides = array<i32>} : memref<16x1xf32, #tpu.memory_space<vmem>>, vector<16x1xf32>,
    return
  }
  func.func @transform_0(%arg0: i32) -> (i32, i32) {
    %c0_i32 = arith.constant 0 : i32
    %c0_i32_0 = arith.constant 0 : i32
    %c0_i32_1 = arith.constant 0 : i32
    return %c0_i32, %c0_i32_0 : i32, i32
  }
  func.func @transform_1(%arg0: i32) -> (i32, i32) {
    %c0_i32 = arith.constant 0 : i32
    %c0_i32_0 = arith.constant 0 : i32
    %c0_i32_1 = arith.constant 0 : i32
    return %c0_i32, %c0_i32_0 : i32, i32
  }
  func.func @transform_2(%arg0: i32) -> (i32, i32) {
    %c0_i32 = arith.constant 0 : i32
    %c0_i32_0 = arith.constant 0 : i32
    %c0_i32_1 = arith.constant 0 : i32
    return %c0_i32, %c0_i32_0 : i32, i32
  }
  func.func @transform_3(%arg0: i32) -> (i32, i32) {
    %c0_i32 = arith.constant 0 : i32
    %c0_i32_0 = arith.constant 0 : i32
    %c0_i32_1 = arith.constant 0 : i32
    return %c0_i32, %c0_i32_0 : i32, i32
  }
  func.func @transform_4(%arg0: i32) -> (i32, i32) {
    %c0_i32 = arith.constant 0 : i32
    %c0_i32_0 = arith.constant 0 : i32
    %c0_i32_1 = arith.constant 0 : i32
    return %c0_i32, %c0_i32_0 : i32, i32
  }
  func.func @transform_5(%arg0: i32) -> (i32, i32) {
    %c0_i32 = arith.constant 0 : i32
    %c0_i32_0 = arith.constant 0 : i32
    %c0_i32_1 = arith.constant 0 : i32
    return %c0_i32, %c0_i32_0 : i32, i32
  }
  func.func @transform_6(%arg0: i32) -> (i32, i32) {
    %c0_i32 = arith.constant 0 : i32
    %c0_i32_0 = arith.constant 0 : i32
    %c0_i32_1 = arith.constant 0 : i32
    return %c0_i32, %c0_i32_0 : i32, i32
  }
  func.func @transform_7(%arg0: i32) -> (i32, i32) {
    %c0_i32 = arith.constant 0 : i32
    %c0_i32_0 = arith.constant 0 : i32
    %c0_i32_1 = arith.constant 0 : i32
    return %c0_i32, %c0_i32_0 : i32, i32
  }
  func.func @transform_8(%arg0: i32) -> (i32, i32) {
    %c0_i32 = arith.constant 0 : i32
    %c0_i32_0 = arith.constant 0 : i32
    %c0_i32_1 = arith.constant 0 : i32
    return %c0_i32, %c0_i32_0 : i32, i32
  }
  func.func @transform_9(%arg0: i32) -> (i32, i32) {
    %c0_i32 = arith.constant 0 : i32
    %c0_i32_0 = arith.constant 0 : i32
    %c0_i32_1 = arith.constant 0 : i32
    return %c0_i32, %c0_i32_0 : i32, i32
  }
}

</mosaic_0001>

<llo_original>
// kernel: tpu_custom_call.1
$region0: #{tpu_custom_call.1}
  #allocation0 [shape = 'u32[]', space=smem, size = 0x4, offset = 0x4, fixed_abs, tag = 'smem constant byte address 0x4 - core index']
  #allocation1 [shape = 'u32[144,128]{1,0:T(1,128)}', space=vmem, size = 0x12000, scoped, tag = 'internal scratch']
  %s0 = inlined_call_operand.vmem [shape: f32[16,32], index: 0, kind: input, shape index: {}]
  %s1 = inlined_call_operand.vmem [shape: f32[16,1], index: 1, kind: input, shape index: {}]
  %s2 = inlined_call_operand.vmem [shape: f32[16,1], index: 2, kind: input, shape index: {}]
  %s3 = inlined_call_operand.vmem [shape: f32[1,16], index: 3, kind: input, shape index: {}]
  %s4 = inlined_call_operand.vmem [shape: f32[1,16], index: 4, kind: input, shape index: {}]
  %s5 = inlined_call_operand.vmem [shape: f32[16,16], index: 5, kind: input, shape index: {}]
  %s6 = inlined_call_operand.vmem [shape: f32[16,1], index: 6, kind: output, shape index: {0}]
  %s7 = inlined_call_operand.vmem [shape: f32[16,1], index: 7, kind: output, shape index: {1}]
  %s8 = inlined_call_operand.hbm [shape: f32[16,16], index: 8, kind: output, shape index: {2}]
  %s9 = inlined_call_operand.hbm [shape: f32[1,1], index: 9, kind: output, shape index: {3}]
  %10 = xla_tuple %s6, %s7, %s8, %s9
  %s11 = sld [smem:[#allocation0]]
  $region58: #{tpu_custom_call.1} parent=0
    _
  %s13 = ssub.s32 1, %s11
  %s14 = scalar_select 0, %s13, %s11
  $region1: #{tpu_custom_call.1} parent=0
    #allocation2 [shape = 'u8[8192]{0}', space=vmem, size = 0x2000, scoped, tag = 'output window, operand 2, single buffered']
    #allocation3 [shape = 's32[1]{0}', space=sflag, size = 0x4, scoped, tag = 'scoped memory for tpu_custom_call.1']
    #allocation4 [shape = 'u8[512]{0}', space=vmem, size = 0x400, scoped, tag = 'output window, operand 3, single buffered']
    #allocation5 [shape = 's32[1]{0}', space=sflag, size = 0x4, scoped, tag = 'scoped memory for tpu_custom_call.1']
    %15 = vsyncpa [#allocation3], 0
    %16 = vsyncpa [#allocation5], 0
    // Predicated region
    $region2: #{tpu_custom_call.1} parent=1 // pred_check
      _
    $region3: #{tpu_custom_call.1} parent=1 // pred_check_branch
      %18 = sbr.rel (0) target = $region5
    $region4: #{tpu_custom_call.1} parent=1 // pred_region
      _
    $region5: #{tpu_custom_call.1} parent=1 // pred_fallthru
      _
    // Predicated region
    $region6: #{tpu_custom_call.1} parent=1 // pred_check
      _
    $region7: #{tpu_custom_call.1} parent=1 // pred_check_branch
      %20 = sbr.rel (0) target = $region9
    $region8: #{tpu_custom_call.1} parent=1 // pred_region
      _
    $region9: #{tpu_custom_call.1} parent=1 // pred_fallthru
      _
    // Predicated region
    $region10: #{tpu_custom_call.1} parent=1 // pred_check
      _
    $region11: #{tpu_custom_call.1} parent=1 // pred_check_branch
      %22 = sbr.rel (0) target = $region13
    $region12: #{tpu_custom_call.1} parent=1 // pred_region
      _
    $region13: #{tpu_custom_call.1} parent=1 // pred_fallthru
      _
    // Predicated region
    $region14: #{tpu_custom_call.1} parent=1 // pred_check
      _
    $region15: #{tpu_custom_call.1} parent=1 // pred_check_branch
      %24 = sbr.rel (0) target = $region17
    $region16: #{tpu_custom_call.1} parent=1 // pred_region
      _
    $region17: #{tpu_custom_call.1} parent=1 // pred_fallthru
      _
    // Predicated region
    $region18: #{tpu_custom_call.1} parent=1 // pred_check
      _
    $region19: #{tpu_custom_call.1} parent=1 // pred_check_branch
      %26 = sbr.rel (0) target = $region21
    $region20: #{tpu_custom_call.1} parent=1 // pred_region
      _
    $region21: #{tpu_custom_call.1} parent=1 // pred_fallthru
      _
    // Predicated region
    $region22: #{tpu_custom_call.1} parent=1 // pred_check
      _
    $region23: #{tpu_custom_call.1} parent=1 // pred_check_branch
      %28 = sbr.rel (0) target = $region25
    $region24: #{tpu_custom_call.1} parent=1 // pred_region
      _
    $region25: #{tpu_custom_call.1} parent=1 // pred_fallthru
      _
    %v29 = vld [vmem:[%s0] sm:$0xff]
    %v30 = vld [vmem:[%s0 + $0x8] sm:$0xff]
    %v31 = vld [vmem:[%s1] sm:$0xff]
    %v32 = vld [vmem:[%s1 + $0x8] sm:$0xff]
    %v33 = vld [vmem:[%s2] sm:$0xff]
    %v34 = vld [vmem:[%s2 + $0x8] sm:$0xff]
    %v35 = vld [vmem:[%s3] sm:$0x1]
    %v36 = vld [vmem:[%s4] sm:$0x1]
    %v37 = vld [vmem:[%s5] sm:$0xff]
    %v38 = vld [vmem:[%s5 + $0x8] sm:$0xff]
    %vm39 = vcmask 261120
    %v41 = vsel %vm39, %v29, 0
    %v44 = vsel %vm39, %v30, 0
    %46 = vmatprep.subr.mxu0 0.0
    %47 = vmatpush1.xpose.msra.mxu0 %v41
    %48 = vmatprep.subr.mxu0 0.0
    %49 = vmatpush1.xpose.msra.mxu0 %v44
    %50 = vmatprep.subr.mxu0 0.0
    %51 = vmatpush1.xpose.msra.mxu0 0.0
    %52 = vmatprep.subr.mxu0 0.0
    %53 = vmatpush1.xpose.msra.mxu0 0.0
    %54 = vmatprep.subr.mxu0 0.0
    %55 = vmatpush1.xpose.msra.mxu0 0.0
    %56 = vmatprep.subr.mxu0 0.0
    %57 = vmatpush1.xpose.msra.mxu0 0.0
    %58 = vmatprep.subr.mxu0 0.0
    %59 = vmatpush1.xpose.msra.mxu0 0.0
    %60 = vmatprep.subr.mxu0 0.0
    %61 = vmatpush1.xpose.msra.mxu0 0.0
    %62 = vmatprep.subr.mxu0 0.0
    %63 = vmatpush1.xpose.msra.mxu0 0.0
    %64 = vmatprep.subr.mxu0 0.0
    %65 = vmatpush1.xpose.msra.mxu0 0.0
    %66 = vmatprep.subr.mxu0 0.0
    %67 = vmatpush1.xpose.msra.mxu0 0.0
    %68 = vmatprep.subr.mxu0 0.0
    %69 = vmatpush1.xpose.msra.mxu0 0.0
    %70 = vmatprep.subr.mxu0 0.0
    %71 = vmatpush1.xpose.msra.mxu0 0.0
    %72 = vmatprep.subr.mxu0 0.0
    %73 = vmatpush1.xpose.msra.mxu0 0.0
    %74 = vmatprep.subr.mxu0 0.0
    %75 = vmatpush1.xpose.msra.mxu0 0.0
    %76 = vmatprep.subr.mxu0 0.0
    %77 = vmatpush1.xpose.msra.mxu0 0.0
    %78 = vmatprep.subr.mxu0 0.0
    %79 = vmatpush1.xpose.msra.mxu0 0.0
    %80 = vmatprep.subr.mxu0 0.0
    %81 = vmatpush1.xpose.msra.mxu0 0.0
    %82 = vmatprep.subr.mxu0 0.0
    %83 = vmatpush1.xpose.msra.mxu0 0.0
    %84 = vmatprep.subr.mxu0 0.0
    %85 = vmatpush1.xpose.msra.mxu0 0.0
    %86 = vmatprep.subr.mxu0 0.0
    %87 = vmatpush1.xpose.msra.mxu0 0.0
    %88 = vmatprep.subr.mxu0 0.0
    %89 = vmatpush1.xpose.msra.mxu0 0.0
    %90 = vmatprep.subr.mxu0 0.0
    %91 = vmatpush1.xpose.msra.mxu0 0.0
    %92 = vmatprep.subr.mxu0 0.0
    %93 = vmatpush1.xpose.msra.mxu0 0.0
    %94 = vmatprep.subr.mxu0 0.0
    %95 = vmatpush1.xpose.msra.mxu0 0.0
    %96 = vmatprep.subr.mxu0 0.0
    %97 = vmatpush1.xpose.msra.mxu0 0.0
    %98 = vmatprep.subr.mxu0 0.0
    %99 = vmatpush1.xpose.msra.mxu0 0.0
    %100 = vmatprep.subr.mxu0 0.0
    %101 = vmatpush1.xpose.msra.mxu0 0.0
    %102 = vmatprep.subr.mxu0 0.0
    %103 = vmatpush1.xpose.msra.mxu0 0.0
    %104 = vmatprep.subr.mxu0 0.0
    %105 = vmatpush1.xpose.msra.mxu0 0.0
    %106 = vmatprep.subr.mxu0 0.0
    %107 = vmatpush1.xpose.msra.mxu0 0.0
    %108 = vmatprep.subr.mxu0 0.0
    %109 = vmatpush1.xpose.msra.mxu0 0.0
    %110 = vmatprep.mubr.f32.mxu0 0.0
    %111 = vmatmul.mubr.f32.gmra.mrb[0].mxu0 %v41
    %v112 = vpop.f32.mrb[0].mxu0
    %v113 = vadd.f32 0.0, %v112
    %v114 = vpop.f32.mrb[0].mxu0
    %115 = vmatprep.mubr.f32.mxu0 0.0
    %116 = vmatmul.mubr.f32.gmra.mrb[0].mxu0 %v44
    %v117 = vpop.f32.mrb[0].mxu0
    %v118 = vadd.f32 0.0, %v117
    %v119 = vpop.f32.mrb[0].mxu0
    %120 = vdwg.mxu0
    %v121 = vlaneseq
    %v122 = vshrl.u32 %v121, 7
    %v123 = vadd.s32 %v122, 8
    %v124 = vlaneseq
    %v125 = vand.u32 %v124, 127
    %vm126 = vcmp.eq.s32.totalorder %v122, %v125
    %vm127 = vcmp.eq.s32.totalorder %v123, %v125
    %v128 = vsel %vm126, 1, 0
    %v129 = vsel %vm127, 1, 0
    %v130 = vcvt.s32.f32 %v128
    %v131 = vcvt.s32.f32 %v129
    %v132 = vmul.f32 %v113, %v130
    %v133 = vmul.f32 %v118, %v131
    %vm134 = vcmask 130048
    %v135 = vsel %vm134, %v132, 0.0
    %136 = vadd.xlane.f32.xlu0 %v135
    %v137 = vpop.xlane.xlu0 %136
    %v138 = vsel %vm134, %v133, 0.0
    %139 = vadd.xlane.f32.xlu0 %v138
    %v140 = vpop.xlane.xlu0 %139
    %v141 = vadd.f32 %v135, %v138
    %v142 = vrot.slane %v141, 4
    %v143 = vadd.f32 %v141, %v142
    %v144 = vrot.slane %v143, 2
    %v145 = vadd.f32 %v143, %v144
    %v146 = vrot.slane %v145, 1
    %v147 = vadd.f32 %v145, %v146
    %v148 = vadd.f32 %v137, %v147
    %v149 = vadd.f32 %v140, %v147
    %v150 = vmul.f32 %v113, 2.0
    %v151 = vmul.f32 %v118, 2.0
    %v152 = vsub.f32 %v148, %v150
    %v153 = vsub.f32 %v149, %v151
    %v154 = vsub.f32 0.0, %v152
    %v155 = vsub.f32 0.0, %v153
    %v156 = vmul.f32 %v154, 1.442695
    %v157 = vpow.pop %v156
    %v158 = vmul.f32 %v155, 1.442695
    %v159 = vpow.pop %v158
    %160 = vst.msk [vmem:[#allocation2] sm:$0xff] %vm134, %v157
    %161 = vst.msk [vmem:[#allocation2 + $0x8] sm:$0xff] %vm134, %v159
    %v163 = vsel %vm134, %v157, 0
    %v166 = vsel %vm134, %v159, 0
    %168 = vmatprep.subr.mxu0 0.0
    %169 = vmatpush1.msra.mxu0 %v37
    %170 = vmatprep.subr.mxu0 0.0
    %171 = vmatpush1.msra.mxu0 %v38
    %172 = vmatprep.subr.mxu0 0.0
    %173 = vmatpush1.msra.mxu0 0.0
    %174 = vmatprep.subr.mxu0 0.0
    %175 = vmatpush1.msra.mxu0 0.0
    %176 = vmatprep.subr.mxu0 0.0
    %177 = vmatpush1.msra.mxu0 0.0
    %178 = vmatprep.subr.mxu0 0.0
    %179 = vmatpush1.msra.mxu0 0.0
    %180 = vmatprep.subr.mxu0 0.0
    %181 = vmatpush1.msra.mxu0 0.0
    %182 = vmatprep.subr.mxu0 0.0
    %183 = vmatpush1.msra.mxu0 0.0
    %184 = vmatprep.subr.mxu0 0.0
    %185 = vmatpush1.msra.mxu0 0.0
    %186 = vmatprep.subr.mxu0 0.0
    %187 = vmatpush1.msra.mxu0 0.0
    %188 = vmatprep.subr.mxu0 0.0
    %189 = vmatpush1.msra.mxu0 0.0
    %190 = vmatprep.subr.mxu0 0.0
    %191 = vmatpush1.msra.mxu0 0.0
    %192 = vmatprep.subr.mxu0 0.0
    %193 = vmatpush1.msra.mxu0 0.0
    %194 = vmatprep.subr.mxu0 0.0
    %195 = vmatpush1.msra.mxu0 0.0
    %196 = vmatprep.subr.mxu0 0.0
    %197 = vmatpush1.msra.mxu0 0.0
    %198 = vmatprep.subr.mxu0 0.0
    %199 = vmatpush1.msra.mxu0 0.0
    %200 = vmatprep.subr.mxu0 0.0
    %201 = vmatpush1.msra.mxu0 0.0
    %202 = vmatprep.subr.mxu0 0.0
    %203 = vmatpush1.msra.mxu0 0.0
    %204 = vmatprep.subr.mxu0 0.0
    %205 = vmatpush1.msra.mxu0 0.0
    %206 = vmatprep.subr.mxu0 0.0
    %207 = vmatpush1.msra.mxu0 0.0
    %208 = vmatprep.subr.mxu0 0.0
    %209 = vmatpush1.msra.mxu0 0.0
    %210 = vmatprep.subr.mxu0 0.0
    %211 = vmatpush1.msra.mxu0 0.0
    %212 = vmatprep.subr.mxu0 0.0
    %213 = vmatpush1.msra.mxu0 0.0
    %214 = vmatprep.subr.mxu0 0.0
    %215 = vmatpush1.msra.mxu0 0.0
    %216 = vmatprep.subr.mxu0 0.0
    %217 = vmatpush1.msra.mxu0 0.0
    %218 = vmatprep.subr.mxu0 0.0
    %219 = vmatpush1.msra.mxu0 0.0
    %220 = vmatprep.subr.mxu0 0.0
    %221 = vmatpush1.msra.mxu0 0.0
    %222 = vmatprep.subr.mxu0 0.0
    %223 = vmatpush1.msra.mxu0 0.0
    %224 = vmatprep.subr.mxu0 0.0
    %225 = vmatpush1.msra.mxu0 0.0
    %226 = vmatprep.subr.mxu0 0.0
    %227 = vmatpush1.msra.mxu0 0.0
    %228 = vmatprep.subr.mxu0 0.0
    %229 = vmatpush1.msra.mxu0 0.0
    %230 = vmatprep.subr.mxu0 0.0
    %231 = vmatpush1.msra.mxu0 0.0
    %232 = vmatprep.mubr.f32.mxu0 0.0
    %233 = vmatmul.mubr.f32.gmra.mrb[0].mxu0 %v163
    %v234 = vpop.f32.mrb[0].mxu0
    %v235 = vadd.f32 0.0, %v234
    %v236 = vpop.f32.mrb[0].mxu0
    %237 = vmatprep.mubr.f32.mxu0 0.0
    %238 = vmatmul.mubr.f32.gmra.mrb[0].mxu0 %v166
    %v239 = vpop.f32.mrb[0].mxu0
    %v240 = vadd.f32 0.0, %v239
    %v241 = vpop.f32.mrb[0].mxu0
    %242 = vdwg.mxu0
    %v243 = vsub.f32 %v235, %v37
    %v244 = vsub.f32 %v240, %v38
    %vm245 = vcmp.le.s32.totalorder %v122, %v125
    %v246 = vsel %vm245, 1, 0
    %v247 = vcvt.s32.f32 %v246
    %vm248 = vcmask 64512
    %v250 = vsel %vm248, %v243, 0
    %v253 = vsel %vm248, %v244, 0
    %v256 = vsel %vm248, %v247, 0
    %258 = vmatprep.subr.mxu0 0.0
    %259 = vmatpush1.xpose.msra.mxu0 %v256
    %260 = vmatprep.subr.mxu0 0.0
    %261 = vmatpush1.xpose.msra.mxu0 0.0
    %262 = vmatprep.subr.mxu0 0.0
    %263 = vmatpush1.xpose.msra.mxu0 0.0
    %264 = vmatprep.subr.mxu0 0.0
    %265 = vmatpush1.xpose.msra.mxu0 0.0
    %266 = vmatprep.subr.mxu0 0.0
    %267 = vmatpush1.xpose.msra.mxu0 0.0
    %268 = vmatprep.subr.mxu0 0.0
    %269 = vmatpush1.xpose.msra.mxu0 0.0
    %270 = vmatprep.subr.mxu0 0.0
    %271 = vmatpush1.xpose.msra.mxu0 0.0
    %272 = vmatprep.subr.mxu0 0.0
    %273 = vmatpush1.xpose.msra.mxu0 0.0
    %274 = vmatprep.subr.mxu0 0.0
    %275 = vmatpush1.xpose.msra.mxu0 0.0
    %276 = vmatprep.subr.mxu0 0.0
    %277 = vmatpush1.xpose.msra.mxu0 0.0
    %278 = vmatprep.subr.mxu0 0.0
    %279 = vmatpush1.xpose.msra.mxu0 0.0
    %280 = vmatprep.subr.mxu0 0.0
    %281 = vmatpush1.xpose.msra.mxu0 0.0
    %282 = vmatprep.subr.mxu0 0.0
    %283 = vmatpush1.xpose.msra.mxu0 0.0
    %284 = vmatprep.subr.mxu0 0.0
    %285 = vmatpush1.xpose.msra.mxu0 0.0
    %286 = vmatprep.subr.mxu0 0.0
    %287 = vmatpush1.xpose.msra.mxu0 0.0
    %288 = vmatprep.subr.mxu0 0.0
    %289 = vmatpush1.xpose.msra.mxu0 0.0
    %290 = vmatprep.subr.mxu0 0.0
    %291 = vmatpush1.xpose.msra.mxu0 0.0
    %292 = vmatprep.subr.mxu0 0.0
    %293 = vmatpush1.xpose.msra.mxu0 0.0
    %294 = vmatprep.subr.mxu0 0.0
    %295 = vmatpush1.xpose.msra.mxu0 0.0
    %296 = vmatprep.subr.mxu0 0.0
    %297 = vmatpush1.xpose.msra.mxu0 0.0
    %298 = vmatprep.subr.mxu0 0.0
    %299 = vmatpush1.xpose.msra.mxu0 0.0
    %300 = vmatprep.subr.mxu0 0.0
    %301 = vmatpush1.xpose.msra.mxu0 0.0
    %302 = vmatprep.subr.mxu0 0.0
    %303 = vmatpush1.xpose.msra.mxu0 0.0
    %304 = vmatprep.subr.mxu0 0.0
    %305 = vmatpush1.xpose.msra.mxu0 0.0
    %306 = vmatprep.subr.mxu0 0.0
    %307 = vmatpush1.xpose.msra.mxu0 0.0
    %308 = vmatprep.subr.mxu0 0.0
    %309 = vmatpush1.xpose.msra.mxu0 0.0
    %310 = vmatprep.subr.mxu0 0.0
    %311 = vmatpush1.xpose.msra.mxu0 0.0
    %312 = vmatprep.subr.mxu0 0.0
    %313 = vmatpush1.xpose.msra.mxu0 0.0
    %314 = vmatprep.subr.mxu0 0.0
    %315 = vmatpush1.xpose.msra.mxu0 0.0
    %316 = vmatprep.subr.mxu0 0.0
    %317 = vmatpush1.xpose.msra.mxu0 0.0
    %318 = vmatprep.subr.mxu0 0.0
    %319 = vmatpush1.xpose.msra.mxu0 0.0
    %320 = vmatprep.subr.mxu0 0.0
    %321 = vmatpush1.xpose.msra.mxu0 0.0
    %322 = vmatprep.mubr.f32.mxu0 0.0
    %323 = vmatmul.mubr.f32.gmra.mrb[0].mxu0 %v250
    %v324 = vpop.f32.mrb[0].mxu0
    %v325 = vadd.f32 1e-12, %v324
    %v326 = vpop.f32.mrb[0].mxu0
    %327 = vmatprep.mubr.f32.mxu0 0.0
    %328 = vmatmul.mubr.f32.gmra.mrb[0].mxu0 %v253
    %v329 = vpop.f32.mrb[0].mxu0
    %v330 = vadd.f32 1e-12, %v329
    %v331 = vpop.f32.mrb[0].mxu0
    %332 = vdwg.mxu0
    %335 = vrot.lane.b32.xlu0 %v325, 8
    %v336 = vpop.permute.xlu0 %335
    %337 = vrot.lane.b32.xlu0 %v330, 8
    %v338 = vpop.permute.xlu0 %337
    %v341 = vrcp.pop %v336
    %v342 = vmul.f32 %v243, %v341
    %v343 = vrcp.pop %v338
    %v344 = vmul.f32 %v244, %v343
    %v345 = vmax.f32 %v342, 1e-12
    %v346 = vmax.f32 %v344, 1e-12
    %v347 = vmin.f32 %v345, 1.0
    %v348 = vmin.f32 %v346, 1.0
    %vm349 = vcmp.ge.f32.partialorder %v347, 0.0
    %vm350 = vcmp.ge.f32.partialorder %v348, 0.0
    %vm351 = vcmp.le.f32.partialorder %v347, 1.0
    %vm352 = vcmp.le.f32.partialorder %v348, 1.0
    %vm353 = vmand %vm349, %vm351
    %vm354 = vmand %vm350, %vm352
    %v355 = vsel %vm353, 1, 0
    %v356 = vsel %vm354, 1, 0
    %v357 = vcvt.s32.f32 %v355
    %v358 = vcvt.s32.f32 %v356
    %vm359 = vcmask 130112
    %v360 = vsel %vm359, %v357, inf
    %361 = vmin.xlane.f32.xlu0 %v360
    %v362 = vpop.xlane.xlu0 %361
    %v363 = vsel %vm359, %v358, inf
    %364 = vmin.xlane.f32.xlu0 %v363
    %v365 = vpop.xlane.xlu0 %364
    %v366 = vmin.f32 %v362, %v365
    %v367 = vrot.slane %v366, 4
    %v368 = vmin.f32 %v366, %v367
    %v369 = vrot.slane %v368, 2
    %v370 = vmin.f32 %v368, %v369
    %v371 = vrot.slane %v370, 1
    %v372 = vmin.f32 %v370, %v371
    %vm373 = vcmask 0
    %374 = vst.msk [vmem:[#allocation4] sm:$0x1] %vm373, %v372
    %v375 = vlog2.pop %v347
    %v376 = vmul.f32 %v375, 0.6931472
    %v377 = vlog2.pop %v348
    %v378 = vmul.f32 %v377, 0.6931472
    %v379 = vmax.f32 %v376, -100.0
    %v380 = vmax.f32 %v378, -100.0
    %v381 = vsub.f32 1.0, %v347
    %v382 = vsub.f32 1.0, %v348
    %v383 = vlog2.pop %v381
    %v384 = vmul.f32 %v383, 0.6931472
    %v385 = vlog2.pop %v382
    %v386 = vmul.f32 %v385, 0.6931472
    %v387 = vmax.f32 %v384, -100.0
    %v388 = vmax.f32 %v386, -100.0
    %v389 = vmul.f32 %v37, %v379
    %v390 = vmul.f32 %v38, %v380
    %v391 = vsub.f32 1.0, %v37
    %v392 = vsub.f32 1.0, %v38
    %v393 = vmul.f32 %v391, %v387
    %v394 = vmul.f32 %v392, %v388
    %v395 = vadd.f32 %v389, %v393
    %v396 = vadd.f32 %v390, %v394
    %v397 = vsub.f32 0.0, %v395
    %v398 = vsub.f32 0.0, %v396
    %v399 = vadd.f32 %v381, 1e-12
    %v400 = vadd.f32 %v382, 1e-12
    %v401 = vlog2.pop %v399
    %v402 = vmul.f32 %v401, 0.6931472
    %v403 = vlog2.pop %v400
    %v404 = vmul.f32 %v403, 0.6931472
    %409 = vrot.lane.b32.xlu0 %v397, 120
    %v410 = vpop.permute.xlu0 %409
    %411 = vrot.lane.b32.xlu0 %v398, 120
    %v412 = vpop.permute.xlu0 %411
    %413 = vrot.lane.b32.xlu0 %v402, 120
    %v414 = vpop.permute.xlu0 %413
    %415 = vrot.lane.b32.xlu0 %v404, 120
    %v416 = vpop.permute.xlu0 %415
    %v417 = vsel %vm248, %v410, 0
    %v419 = vsel %vm248, %v412, 0
    %v421 = vsel %vm248, %v414, 0
    %v423 = vsel %vm248, %v416, 0
    %425 = vmatprep.subr.mxu0 0.0
    %426 = vmatpush1.msra.mxu0 %v247
    %427 = vmatprep.subr.mxu0 0.0
    %428 = vmatpush1.msra.mxu0 0.0
    %429 = vmatprep.subr.mxu0 0.0
    %430 = vmatpush1.msra.mxu0 0.0
    %431 = vmatprep.subr.mxu0 0.0
    %432 = vmatpush1.msra.mxu0 0.0
    %433 = vmatprep.subr.mxu0 0.0
    %434 = vmatpush1.msra.mxu0 0.0
    %435 = vmatprep.subr.mxu0 0.0
    %436 = vmatpush1.msra.mxu0 0.0
    %437 = vmatprep.subr.mxu0 0.0
    %438 = vmatpush1.msra.mxu0 0.0
    %439 = vmatprep.subr.mxu0 0.0
    %440 = vmatpush1.msra.mxu0 0.0
    %441 = vmatprep.subr.mxu0 0.0
    %442 = vmatpush1.msra.mxu0 0.0
    %443 = vmatprep.subr.mxu0 0.0
    %444 = vmatpush1.msra.mxu0 0.0
    %445 = vmatprep.subr.mxu0 0.0
    %446 = vmatpush1.msra.mxu0 0.0
    %447 = vmatprep.subr.mxu0 0.0
    %448 = vmatpush1.msra.mxu0 0.0
    %449 = vmatprep.subr.mxu0 0.0
    %450 = vmatpush1.msra.mxu0 0.0
    %451 = vmatprep.subr.mxu0 0.0
    %452 = vmatpush1.msra.mxu0 0.0
    %453 = vmatprep.subr.mxu0 0.0
    %454 = vmatpush1.msra.mxu0 0.0
    %455 = vmatprep.subr.mxu0 0.0
    %456 = vmatpush1.msra.mxu0 0.0
    %457 = vmatprep.subr.mxu0 0.0
    %458 = vmatpush1.msra.mxu0 0.0
    %459 = vmatprep.subr.mxu0 0.0
    %460 = vmatpush1.msra.mxu0 0.0
    %461 = vmatprep.subr.mxu0 0.0
    %462 = vmatpush1.msra.mxu0 0.0
    %463 = vmatprep.subr.mxu0 0.0
    %464 = vmatpush1.msra.mxu0 0.0
    %465 = vmatprep.subr.mxu0 0.0
    %466 = vmatpush1.msra.mxu0 0.0
    %467 = vmatprep.subr.mxu0 0.0
    %468 = vmatpush1.msra.mxu0 0.0
    %469 = vmatprep.subr.mxu0 0.0
    %470 = vmatpush1.msra.mxu0 0.0
    %471 = vmatprep.subr.mxu0 0.0
    %472 = vmatpush1.msra.mxu0 0.0
    %473 = vmatprep.subr.mxu0 0.0
    %474 = vmatpush1.msra.mxu0 0.0
    %475 = vmatprep.subr.mxu0 0.0
    %476 = vmatpush1.msra.mxu0 0.0
    %477 = vmatprep.subr.mxu0 0.0
    %478 = vmatpush1.msra.mxu0 0.0
    %479 = vmatprep.subr.mxu0 0.0
    %480 = vmatpush1.msra.mxu0 0.0
    %481 = vmatprep.subr.mxu0 0.0
    %482 = vmatpush1.msra.mxu0 0.0
    %483 = vmatprep.subr.mxu0 0.0
    %484 = vmatpush1.msra.mxu0 0.0
    %485 = vmatprep.subr.mxu0 0.0
    %486 = vmatpush1.msra.mxu0 0.0
    %487 = vmatprep.subr.mxu0 0.0
    %488 = vmatpush1.msra.mxu0 0.0
    %489 = vmatprep.mubr.f32.mxu0 0.0
    %490 = vmatmul.mubr.f32.gmra.mrb[0].mxu0 %v417
    %v491 = vpop.f32.mrb[0].mxu0
    %v492 = vadd.f32 0.0, %v491
    %v493 = vpop.f32.mrb[0].mxu0
    %494 = vmatprep.mubr.f32.mxu0 0.0
    %495 = vmatmul.mubr.f32.gmra.mrb[0].mxu0 %v419
    %v496 = vpop.f32.mrb[0].mxu0
    %v497 = vadd.f32 0.0, %v496
    %v498 = vpop.f32.mrb[0].mxu0
    %499 = vmatprep.mubr.f32.mxu0 0.0
    %500 = vmatmul.mubr.f32.gmra.mrb[0].mxu0 %v421
    %v501 = vpop.f32.mrb[0].mxu0
    %v502 = vadd.f32 0.0, %v501
    %v503 = vpop.f32.mrb[0].mxu0
    %504 = vmatprep.mubr.f32.mxu0 0.0
    %505 = vmatmul.mubr.f32.gmra.mrb[0].mxu0 %v423
    %v506 = vpop.f32.mrb[0].mxu0
    %v507 = vadd.f32 0.0, %v506
    %v508 = vpop.f32.mrb[0].mxu0
    %509 = vdwg.mxu0
    %v510 = vmul.f32 %v502, 1.442695
    %v511 = vpow.pop %v510
    %v512 = vmul.f32 %v507, 1.442695
    %v513 = vpow.pop %v512
    %v514 = vmul.f32 %v492, %v37
    %v515 = vmul.f32 %v497, %v38
    %v516 = vsel %vm248, %v514, 0.0
    %517 = vadd.xlane.f32.xlu0 %v516
    %v518 = vpop.xlane.xlu0 %517
    %v519 = vsel %vm248, %v515, 0.0
    %520 = vadd.xlane.f32.xlu0 %v519
    %v521 = vpop.xlane.xlu0 %520
    %vm522 = vcmask 7168
    %523 = vst.msk [vmem:[%s6] sm:$0xff] %vm522, %v518
    %524 = vst.msk [vmem:[%s6 + $0x8] sm:$0xff] %vm522, %v521
    %527 = vrot.lane.b32.xlu0 %v37, 120
    %v528 = vpop.permute.xlu0 %527
    %529 = vrot.lane.b32.xlu0 %v38, 120
    %v530 = vpop.permute.xlu0 %529
    %v531 = vsel %vm248, %v528, 0
    %v533 = vsel %vm248, %v530, 0
    %v536 = vsel %vm248, %v511, 0
    %v539 = vsel %vm248, %v513, 0
    %541 = vmatprep.subr.mxu0 0.0
    %542 = vmatpush1.xpose.msra.mxu0 %v536
    %543 = vmatprep.subr.mxu0 0.0
    %544 = vmatpush1.xpose.msra.mxu0 %v539
    %545 = vmatprep.subr.mxu0 0.0
    %546 = vmatpush1.xpose.msra.mxu0 0.0
    %547 = vmatprep.subr.mxu0 0.0
    %548 = vmatpush1.xpose.msra.mxu0 0.0
    %549 = vmatprep.subr.mxu0 0.0
    %550 = vmatpush1.xpose.msra.mxu0 0.0
    %551 = vmatprep.subr.mxu0 0.0
    %552 = vmatpush1.xpose.msra.mxu0 0.0
    %553 = vmatprep.subr.mxu0 0.0
    %554 = vmatpush1.xpose.msra.mxu0 0.0
    %555 = vmatprep.subr.mxu0 0.0
    %556 = vmatpush1.xpose.msra.mxu0 0.0
    %557 = vmatprep.subr.mxu0 0.0
    %558 = vmatpush1.xpose.msra.mxu0 0.0
    %559 = vmatprep.subr.mxu0 0.0
    %560 = vmatpush1.xpose.msra.mxu0 0.0
    %561 = vmatprep.subr.mxu0 0.0
    %562 = vmatpush1.xpose.msra.mxu0 0.0
    %563 = vmatprep.subr.mxu0 0.0
    %564 = vmatpush1.xpose.msra.mxu0 0.0
    %565 = vmatprep.subr.mxu0 0.0
    %566 = vmatpush1.xpose.msra.mxu0 0.0
    %567 = vmatprep.subr.mxu0 0.0
    %568 = vmatpush1.xpose.msra.mxu0 0.0
    %569 = vmatprep.subr.mxu0 0.0
    %570 = vmatpush1.xpose.msra.mxu0 0.0
    %571 = vmatprep.subr.mxu0 0.0
    %572 = vmatpush1.xpose.msra.mxu0 0.0
    %573 = vmatprep.subr.mxu0 0.0
    %574 = vmatpush1.xpose.msra.mxu0 0.0
    %575 = vmatprep.subr.mxu0 0.0
    %576 = vmatpush1.xpose.msra.mxu0 0.0
    %577 = vmatprep.subr.mxu0 0.0
    %578 = vmatpush1.xpose.msra.mxu0 0.0
    %579 = vmatprep.subr.mxu0 0.0
    %580 = vmatpush1.xpose.msra.mxu0 0.0
    %581 = vmatprep.subr.mxu0 0.0
    %582 = vmatpush1.xpose.msra.mxu0 0.0
    %583 = vmatprep.subr.mxu0 0.0
    %584 = vmatpush1.xpose.msra.mxu0 0.0
    %585 = vmatprep.subr.mxu0 0.0
    %586 = vmatpush1.xpose.msra.mxu0 0.0
    %587 = vmatprep.subr.mxu0 0.0
    %588 = vmatpush1.xpose.msra.mxu0 0.0
    %589 = vmatprep.subr.mxu0 0.0
    %590 = vmatpush1.xpose.msra.mxu0 0.0
    %591 = vmatprep.subr.mxu0 0.0
    %592 = vmatpush1.xpose.msra.mxu0 0.0
    %593 = vmatprep.subr.mxu0 0.0
    %594 = vmatpush1.xpose.msra.mxu0 0.0
    %595 = vmatprep.subr.mxu0 0.0
    %596 = vmatpush1.xpose.msra.mxu0 0.0
    %597 = vmatprep.subr.mxu0 0.0
    %598 = vmatpush1.xpose.msra.mxu0 0.0
    %599 = vmatprep.subr.mxu0 0.0
    %600 = vmatpush1.xpose.msra.mxu0 0.0
    %601 = vmatprep.subr.mxu0 0.0
    %602 = vmatpush1.xpose.msra.mxu0 0.0
    %603 = vmatprep.subr.mxu0 0.0
    %604 = vmatpush1.xpose.msra.mxu0 0.0
    %605 = vmatprep.mubr.f32.mxu0 0.0
    %606 = vmatmul.mubr.f32.gmra.mrb[0].mxu0 %v531
    %v607 = vpop.f32.mrb[0].mxu0
    %v608 = vadd.f32 0.0, %v607
    %v609 = vpop.f32.mrb[0].mxu0
    %610 = vmatprep.mubr.f32.mxu0 0.0
    %611 = vmatmul.mubr.f32.gmra.mrb[0].mxu0 %v533
    %v612 = vpop.f32.mrb[0].mxu0
    %v613 = vadd.f32 0.0, %v612
    %v614 = vpop.f32.mrb[0].mxu0
    %615 = vdwg.mxu0
    %v618 = vmul.f32 %v511, %v528
    %v619 = vmul.f32 %v513, %v530
    %v620 = vsel %vm248, %v618, 0.0
    %621 = vadd.xlane.f32.xlu0 %v620
    %v622 = vpop.xlane.xlu0 %621
    %v623 = vsel %vm248, %v619, 0.0
    %624 = vadd.xlane.f32.xlu0 %v623
    %v625 = vpop.xlane.xlu0 %624
    %v626 = vsub.f32 %v622, %v608
    %v627 = vsub.f32 %v625, %v613
    %629 = vset.pattern.permute.xlu0 0
    %630 = vperm.xlu0 %629, %v31
    %v631 = vpop.permute.xlu0 %630
    %634 = vset.pattern.permute.xlu0 0
    %635 = vperm.xlu0 %634, %v32
    %v636 = vpop.permute.xlu0 %635
    %v639 = vlaneseq
    %v640 = vshrl.u32 %v639, 7
    %v641 = vsub.s32 0, %v640
    %v642 = vrot.slane %v35, %v641
    %vm644 = vcmp.lt.f32.partialorder %v631, %v642
    %vm645 = vcmp.lt.f32.partialorder %v636, %v642
    %vm646 = vcmp.eq.f32.partialorder %v631, %v642
    %vm647 = vcmp.eq.f32.partialorder %v636, %v642
    %vm648 = vcmp.eq.f32.partialorder %v36, 0.0
    %v649 = vsel %vm648, 1, 0
    %v650 = vlaneseq
    %v651 = vshrl.u32 %v650, 7
    %v652 = vsub.s32 0, %v651
    %v653 = vrot.slane %v649, %v652
    %vm654 = vcmp.eq.s32.totalorder %v653, 1
    %vm655 = vmand %vm646, %vm654
    %vm656 = vmand %vm647, %vm654
    %vm657 = vmor %vm644, %vm655
    %vm658 = vmor %vm645, %vm656
    %v659 = vsel %vm657, 1, 0
    %v660 = vsel %vm658, 1, 0
    %v661 = vcvt.s32.f32 %v659
    %v662 = vcvt.s32.f32 %v660
    %664 = vset.pattern.permute.xlu0 0
    %665 = vperm.xlu0 %664, %v33
    %v666 = vpop.permute.xlu0 %665
    %669 = vset.pattern.permute.xlu0 0
    %670 = vperm.xlu0 %669, %v34
    %v671 = vpop.permute.xlu0 %670
    %v673 = vmul.f32 %v666, %v661
    %v674 = vmul.f32 %v671, %v662
    %v675 = vrcp.pop 0.5
    %v676 = vmul.f32 %v626, %v675
    %v677 = vmul.f32 %v627, %v675
    %v678 = vmul.f32 %v676, 1.442695
    %v679 = vpow.pop %v678
    %v680 = vmul.f32 %v677, 1.442695
    %v681 = vpow.pop %v680
    %v682 = vmul.f32 %v673, %v679
    %v683 = vmul.f32 %v674, %v681
    %v684 = vsel %vm134, %v682, 0.0
    %685 = vadd.xlane.f32.xlu0 %v684
    %v686 = vpop.xlane.xlu0 %685
    %v687 = vsel %vm134, %v683, 0.0
    %688 = vadd.xlane.f32.xlu0 %v687
    %v689 = vpop.xlane.xlu0 %688
    %v690 = vrcp.pop 16.0
    %v691 = vmul.f32 %v686, %v690
    %v692 = vmul.f32 %v689, %v690
    %693 = vst.msk [vmem:[%s7] sm:$0xff] %vm522, %v691
    %694 = vst.msk [vmem:[%s7 + $0x8] sm:$0xff] %vm522, %v692
    // Predicated region
    $region26: #{tpu_custom_call.1} parent=1 // pred_check
      _
    $region27: #{tpu_custom_call.1} parent=1 // pred_check_branch
      %696 = sbr.rel (0) target = $region29
    $region28: #{tpu_custom_call.1} parent=1 // pred_region
      _
    $region29: #{tpu_custom_call.1} parent=1 // pred_fallthru
      _
    // Predicated region
    $region30: #{tpu_custom_call.1} parent=1 // pred_check
      _
    $region31: #{tpu_custom_call.1} parent=1 // pred_check_branch
      %698 = sbr.rel (0) target = $region33
    $region32: #{tpu_custom_call.1} parent=1 // pred_region
      _
    $region33: #{tpu_custom_call.1} parent=1 // pred_fallthru
      _
    // Predicated region
    $region34: #{tpu_custom_call.1} parent=1 // pred_check
      _
    $region35: #{tpu_custom_call.1} parent=1 // pred_check_branch
      %700 = sbr.rel (0) target = $region37
    $region36: #{tpu_custom_call.1} parent=1 // pred_region
      %s702 = ssub.s32 256, 256
      %703 = vsyncadd [#allocation3], %s702
      %s704 = sshll.u32 [#allocation2], 4
      %s705 = int_to_ptr.vmem [resolvable:$true] %s704
      %710 = dma.vmem_to_hbm [thread:$0]  %s705, 256, %s8, [#allocation3], 128, 128, 8
    $region37: #{tpu_custom_call.1} parent=1 // pred_fallthru
      _
    // Predicated region
    $region38: #{tpu_custom_call.1} parent=1 // pred_check
      _
    $region39: #{tpu_custom_call.1} parent=1 // pred_check_branch
      %712 = sbr.rel (0) target = $region41
    $region40: #{tpu_custom_call.1} parent=1 // pred_region
      %s714 = ssub.s32 16, 16
      %715 = vsyncadd [#allocation5], %s714
      %s717 = sshll.u32 [#allocation4], 4
      %s718 = int_to_ptr.vmem [resolvable:$true] %s717
      %720 = dma.vmem_to_hbm [thread:$0]  %s718, 16, %s9, [#allocation5]
    $region41: #{tpu_custom_call.1} parent=1 // pred_fallthru
      _
    // Predicated region
    $region42: #{tpu_custom_call.1} parent=1 // pred_check
      _
    $region43: #{tpu_custom_call.1} parent=1 // pred_check_branch
      %722 = sbr.rel (0) target = $region45
    $region44: #{tpu_custom_call.1} parent=1 // pred_region
      _
    $region45: #{tpu_custom_call.1} parent=1 // pred_fallthru
      _
    // Predicated region
    $region46: #{tpu_custom_call.1} parent=1 // pred_check
      _
    $region47: #{tpu_custom_call.1} parent=1 // pred_check_branch
      %724 = sbr.rel (0) target = $region49
    $region48: #{tpu_custom_call.1} parent=1 // pred_region
      _
    $region49: #{tpu_custom_call.1} parent=1 // pred_fallthru
      _
    // Predicated region
    $region50: #{tpu_custom_call.1} parent=1 // pred_check
      _
    $region51: #{tpu_custom_call.1} parent=1 // pred_check_branch
      %726 = sbr.rel (0) target = $region53
    $region52: #{tpu_custom_call.1} parent=1 // pred_region
      %727 = dma.done [#allocation3], 256
    $region53: #{tpu_custom_call.1} parent=1 // pred_fallthru
      _
    // Predicated region
    $region54: #{tpu_custom_call.1} parent=1 // pred_check
      _
    $region55: #{tpu_custom_call.1} parent=1 // pred_check_branch
      %729 = sbr.rel (0) target = $region57
    $region56: #{tpu_custom_call.1} parent=1 // pred_region
      %730 = dma.done [#allocation5], 16
    $region57: #{tpu_custom_call.1} parent=1 // pred_fallthru
      _
    %731 = vsyncpa [#allocation3], 1
    %732 = vsyncpa [#allocation5], 1

</llo_original>
